<compile_context>
chip_gen: v7x
topology: tpu7x:2x2x1
jax: 0.10.0
libtpu: 0.0.40
codegen_flags: <defaults>
</compile_context>

<pallas_src>
import jax
import jax.numpy as jnp
from jax.experimental import pallas as pl
from jax.experimental.pallas import tpu as pltpu

_VMEM_BUDGET = 16 << 20   # conservative per-call working-set budget (bytes)
_VMEM_LIMIT = 32 << 20    # explicit scoped-VMEM limit handed to the compiler


def _round_up(x, m):
    return (x + m - 1) // m * m


# ----------------------------------------------------------------------------
# Pallas kernels: fused matmul + bias
# ----------------------------------------------------------------------------
def _xw_bias_kernel(x_ref, w_ref, b_ref, o_ref):
    # (tm, K) @ (K, N) on the MXU (bf16 in, f32 accumulate), bias on the VPU.
    o_ref[...] = (
        jnp.dot(x_ref[...], w_ref[...], preferred_element_type=jnp.float32)
        + b_ref[...]
    ).astype(o_ref.dtype)


def _wx_bias_kernel(w_ref, x_ref, b_ref, o_ref):
    # (C_out, C_in) @ (C_in, t_hw): H*W on the lane axis -> lane-dense stores.
    o_ref[...] = (
        jnp.dot(w_ref[...], x_ref[...], preferred_element_type=jnp.float32)
        + b_ref[...]
    ).astype(o_ref.dtype)


# ----------------------------------------------------------------------------
# Tile-size selection (VMEM-budgeted, >=2 grid steps preferred for v7x)
# ----------------------------------------------------------------------------
def _pick_row_tile(m_pad, k, n, budget=_VMEM_BUDGET):
    """Largest row tile (multiple of 8) s.t. resident bf16 weights + f32 bias +
    double-buffered bf16 input / f32 output tiles fit the budget."""
    resident = k * n * 2 + n * 4
    candidates = [t for t in (1024, 512, 256, 128, 64, 32, 16, 8) if t <= m_pad]
    for tm in candidates:
        working = 2 * tm * (k * 2 + n * 4)
        if resident + working > budget:
            continue
        if tm == m_pad and m_pad >= 16:     # keep >= 2 grid steps (v7x dual TC)
            continue
        return tm
    return candidates[-1] if candidates else m_pad


def _pick_lane_tile(hw, cin, cout, nbatch, budget=_VMEM_BUDGET):
    """Lane (H*W) tile for the 1x1-conv kernel: multiple of 128, VMEM-bounded."""
    if hw <= 128:
        return hw                           # full-extent block is always legal
    resident = cout * cin * 2 + cout * 4
    for t in (2048, 1024, 512, 256, 128):
        if t > hw:
            continue
        if nbatch == 1 and pl.cdiv(hw, t) < 2:   # keep >= 2 steps for v7x
            continue
        working = 2 * t * (cin * 2 + cout * 4)
        if resident + working <= budget:
            return t
    return 128


# ----------------------------------------------------------------------------
# Module-level wrappers
# ----------------------------------------------------------------------------
def linear_bias(x, w_t, b2, *, out_dtype=jnp.float32):
    """y = x @ w_t + b.  x: (M, K); w_t: (K, N) pre-transposed; b2: (1, N)."""
    M, K = x.shape
    K2, N = w_t.shape
    assert K == K2, (K, K2)

    m_pad = _round_up(M, 8)
    x16 = x.astype(jnp.bfloat16)
    if m_pad != M:
        x16 = jnp.pad(x16, ((0, m_pad - M), (0, 0)))

    tm = _pick_row_tile(m_pad, K, N)
    grid_m = pl.cdiv(m_pad, tm)

    cost = pl.CostEstimate(
        flops=2 * m_pad * K * N,
        transcendentals=0,
        bytes_accessed=m_pad * K * 2 + K * N * 2 + m_pad * N * 4 + N * 4,
    )

    out = pl.pallas_call(
        _xw_bias_kernel,
        out_shape=jax.ShapeDtypeStruct((m_pad, N), out_dtype),
        grid_spec=pltpu.PrefetchScalarGridSpec(
            num_scalar_prefetch=0,
            grid=(grid_m,),
            in_specs=[
                pl.BlockSpec((tm, K), lambda i: (i, 0)),   # row-tiled activations
                pl.BlockSpec((K, N), lambda i: (0, 0)),    # resident bf16 weight
                pl.BlockSpec((1, N), lambda i: (0, 0)),    # resident f32 bias
            ],
            out_specs=pl.BlockSpec((tm, N), lambda i: (i, 0)),
        ),
        compiler_params=pltpu.CompilerParams(
            dimension_semantics=("parallel",),
            vmem_limit_bytes=_VMEM_LIMIT,
        ),
        cost_estimate=cost,
    )(x16, w_t.astype(jnp.bfloat16), b2.astype(jnp.float32))

    return out[:M] if m_pad != M else out


def pre_quantization_conv(y_nchw, w2d, b2, *, out_dtype=jnp.float32):
    """nn.Conv2d(h_dim, embedding_dim, kernel_size=1, stride=1).

    y_nchw: (N, C_in, H, W); w2d: (C_out, C_in) (conv weight reshaped once at
    init); b2: (C_out, 1).  Returns (N, C_out, H, W) like nn.Conv2d, with no
    NCHW<->NHWC transposes: computed as W @ X per image, H*W on the lane axis.
    """
    n, cin, h, wd = y_nchw.shape
    cout = w2d.shape[0]
    hw = h * wd

    x = y_nchw.reshape(n, cin, hw).astype(jnp.bfloat16)
    t_hw = _pick_lane_tile(hw, cin, cout, n)
    grid = (n, pl.cdiv(hw, t_hw))

    cost = pl.CostEstimate(
        flops=2 * n * cout * cin * hw,
        transcendentals=0,
        bytes_accessed=(n * cin * hw * 2 + cout * cin * 2
                        + n * cout * hw * 4 + cout * 4),
    )

    out = pl.pallas_call(
        _wx_bias_kernel,
        out_shape=jax.ShapeDtypeStruct((n, cout, hw), out_dtype),
        grid_spec=pltpu.PrefetchScalarGridSpec(
            num_scalar_prefetch=0,
            grid=grid,
            in_specs=[
                pl.BlockSpec((cout, cin), lambda i, j: (0, 0)),           # weight
                pl.BlockSpec((None, cin, t_hw), lambda i, j: (i, 0, j)),  # image cols
                pl.BlockSpec((cout, 1), lambda i, j: (0, 0)),             # bias
            ],
            out_specs=pl.BlockSpec((None, cout, t_hw), lambda i, j: (i, 0, j)),
        ),
        compiler_params=pltpu.CompilerParams(
            dimension_semantics=("parallel", "parallel"),
            vmem_limit_bytes=_VMEM_LIMIT,
        ),
        cost_estimate=cost,
    )(w2d.astype(jnp.bfloat16), x, b2.astype(jnp.float32))

    return out.reshape(n, cout, h, wd)


class EmbeddingVQVAEPallas:
    """Pallas re-implementation of the layers Embedding_VQVAE defines itself."""

    def __init__(self, key, h_dim, embedding_dim, projection_dim):
        k1, k2, k3, k4 = jax.random.split(key, 4)
        # f32 master weights (shapes follow the nn.Module __init__)
        self.lin_w = 0.02 * jax.random.normal(
            k1, (projection_dim, projection_dim), jnp.float32)
        self.lin_b = 0.01 * jax.random.normal(k2, (projection_dim,), jnp.float32)
        self.conv_w = 0.02 * jax.random.normal(
            k3, (embedding_dim, h_dim, 1, 1), jnp.float32)
        self.conv_b = 0.01 * jax.random.normal(k4, (embedding_dim,), jnp.float32)

        # kernel-ready layouts computed ONCE (no per-forward transpose/reshape)
        self.lin_w_t = jnp.asarray(self.lin_w.T, jnp.bfloat16)          # (P_in, P_out)
        self.lin_b2 = self.lin_b.reshape(1, -1).astype(jnp.float32)     # (1, P_out)
        self.conv_w2d = jnp.asarray(
            self.conv_w.reshape(embedding_dim, h_dim), jnp.bfloat16)    # (C_out, C_in)
        self.conv_b2 = self.conv_b.reshape(-1, 1).astype(jnp.float32)   # (C_out, 1)

    def forward(self, text_features):
        # tokenizer + clip_encoder.get_text_features are external modules
        # (no definition in this file) -> we take their output as the input.
        embd = linear_bias(text_features, self.lin_w_t, self.lin_b2)
        # TODO(synk): self.vqvae(embd) — VQVAE class is external/undefined here.
        return embd

    def training_forward(self, text_features, encoder_features_nchw):
        text_emb = linear_bias(text_features, self.lin_w_t, self.lin_b2)
        # TODO(synk): vqvae_encoder is external; its NCHW feature map is an input.
        img_emb = pre_quantization_conv(
            encoder_features_nchw, self.conv_w2d, self.conv_b2)
        return text_emb, img_emb


# ----------------------------------------------------------------------------
if __name__ == "__main__":
    key = jax.random.PRNGKey(0)
    k_mod, k_txt, k_img = jax.random.split(key, 3)

    # small shapes consistent with the module
    batch = 2
    projection_dim = 32      # clip_config.projection_dim
    h_dim = 16               # Encoder output channels
    embedding_dim = 8        # VQ codebook dim
    spatial = 8              # Encoder output spatial size

    model = EmbeddingVQVAEPallas(k_mod, h_dim, embedding_dim, projection_dim)

    text_features = jax.random.normal(k_txt, (batch, projection_dim), jnp.float32)
    encoder_feats = jax.random.normal(
        k_img, (batch, h_dim, spatial, spatial), jnp.float32)   # NCHW

    # forward (text->embedding) path
    embd = model.forward(text_features)
    # training path (text emb + image emb via 1x1 conv)
    text_emb, img_emb = model.training_forward(text_features, encoder_feats)
    jax.block_until_ready((embd, text_emb, img_emb))

    # correctness vs plain-JAX f32 reference (kernel uses bf16 inputs -> wider tol)
    ref_lin = text_features @ model.lin_w.T + model.lin_b
    ref_conv = (
        jnp.einsum("nchw,oc->nohw", encoder_feats,
                   model.conv_w.reshape(embedding_dim, h_dim))
        + model.conv_b[None, :, None, None]
    )
    assert embd.shape == (batch, projection_dim)
    assert img_emb.shape == (batch, embedding_dim, spatial, spatial)
    assert jnp.allclose(embd, ref_lin, atol=2e-2, rtol=2e-2)
    assert jnp.allclose(text_emb, ref_lin, atol=2e-2, rtol=2e-2)
    assert jnp.allclose(img_emb, ref_conv, atol=2e-2, rtol=2e-2)

    print("KERNEL_OK")
</pallas_src>

<mosaic_0001>
module attributes {stable_mosaic.version = 11 : i64} {
  func.func @_xw_bias_kernel(%arg0: i32, %arg1: memref<8x32xbf16, #tpu.memory_space<vmem>>, %arg2: memref<32x32xbf16, #tpu.memory_space<vmem>>, %arg3: memref<1x32xf32, #tpu.memory_space<vmem>>, %arg4: memref<8x32xf32, #tpu.memory_space<vmem>>) attributes {dimension_semantics = [#tpu.dimension_semantics<parallel>], iteration_bounds = array<i64: 1>, scalar_prefetch = 0 : i64, scratch_operands = 0 : i64, tpu.core_type = #tpu.core_type<tc>, window_params = [{transform_indices = @transform_0, window_bounds = array<i64: 8, 32>}, {pipeline_mode = #tpu.pipeline_mode<synchronous>, transform_indices = @transform_1, window_bounds = array<i64: 32, 32>}, {pipeline_mode = #tpu.pipeline_mode<synchronous>, transform_indices = @transform_2, window_bounds = array<i64: 1, 32>}, {transform_indices = @transform_3, window_bounds = array<i64: 8, 32>}]} {
    %c0 = arith.constant 0 : index
    %c0_0 = arith.constant 0 : index
    %0 = vector.load %arg1[%c0, %c0_0] : memref<8x32xbf16, #tpu.memory_space<vmem>>, vector<8x32xbf16>
    %c0_1 = arith.constant 0 : index
    %c0_2 = arith.constant 0 : index
    %1 = vector.load %arg2[%c0_1, %c0_2] : memref<32x32xbf16, #tpu.memory_space<vmem>>, vector<32x32xbf16>
    %cst = arith.constant dense<0.000000e+00> : vector<8x32xf32>
    %2 = tpu.matmul %0, %1, %cst {dimension_numbers = #tpu.dot_dimension_numbers<[1], [0], [0], [1], [0, 0, 1, 1], [], []>} : vector<8x32xbf16>, vector<32x32xbf16>, vector<8x32xf32> -> vector<8x32xf32>
    %c0_3 = arith.constant 0 : index
    %c0_4 = arith.constant 0 : index
    %3 = vector.load %arg3[%c0_3, %c0_4] : memref<1x32xf32, #tpu.memory_space<vmem>>, vector<1x32xf32>
    %4 = vector.broadcast %3 : vector<1x32xf32> to vector<8x32xf32>
    %5 = arith.addf %2, %4 : vector<8x32xf32>
    %c0_5 = arith.constant 0 : index
    %c0_6 = arith.constant 0 : index
    %6 = vector.load %arg4[%c0_5, %c0_6] : memref<8x32xf32, #tpu.memory_space<vmem>>, vector<8x32xf32>
    tpu.vector_store %arg4[%c0_5, %c0_6], %5 {strides = array<i32>} : memref<8x32xf32, #tpu.memory_space<vmem>>, vector<8x32xf32>,
    return
  }
  func.func @transform_0(%arg0: i32) -> (i32, i32) {
    %c0_i32 = arith.constant 0 : i32
    %c0_i32_0 = arith.constant 0 : i32
    return %arg0, %c0_i32 : i32, i32
  }
  func.func @transform_1(%arg0: i32) -> (i32, i32) {
    %c0_i32 = arith.constant 0 : i32
    %c0_i32_0 = arith.constant 0 : i32
    %c0_i32_1 = arith.constant 0 : i32
    return %c0_i32, %c0_i32_0 : i32, i32
  }
  func.func @transform_2(%arg0: i32) -> (i32, i32) {
    %c0_i32 = arith.constant 0 : i32
    %c0_i32_0 = arith.constant 0 : i32
    %c0_i32_1 = arith.constant 0 : i32
    return %c0_i32, %c0_i32_0 : i32, i32
  }
  func.func @transform_3(%arg0: i32) -> (i32, i32) {
    %c0_i32 = arith.constant 0 : i32
    %c0_i32_0 = arith.constant 0 : i32
    return %arg0, %c0_i32 : i32, i32
  }
}

</mosaic_0001>

<llo_original>
// kernel: tpu_custom_call.1
$region0: #{tpu_custom_call.1}
  #allocation0 [shape = 'u32[]', space=smem, size = 0x4, offset = 0x4, fixed_abs, tag = 'smem constant byte address 0x4 - core index']
  #allocation1 [shape = 'u32[144,128]{1,0:T(1,128)}', space=vmem, size = 0x12000, scoped, tag = 'internal scratch']
  %s0 = inlined_call_operand.hbm [shape: bf16[8,32], index: 0, kind: input, shape index: {}]
  %s1 = inlined_call_operand.hbm [shape: bf16[32,32], index: 1, kind: input, shape index: {}]
  %s2 = inlined_call_operand.vmem [shape: f32[1,32], index: 2, kind: input, shape index: {}]
  %s3 = inlined_call_operand.hbm [shape: f32[8,32], index: 3, kind: output, shape index: {}]
  %s4 = sld [smem:[#allocation0]]
  $region30: #{tpu_custom_call.1} parent=0
    _
  %s6 = ssub.s32 1, %s4
  %s7 = scalar_select 0, %s6, %s4
  $region1: #{tpu_custom_call.1} parent=0
    #allocation2 [shape = 'u8[2048]{0}', space=vmem, size = 0x800, scoped, tag = 'input window, operand 0, single buffered']
    #allocation3 [shape = 's32[1]{0}', space=sflag, size = 0x4, scoped, tag = 'scoped memory for tpu_custom_call.1']
    #allocation4 [shape = 's32[1]{0}', space=sflag, size = 0x4, scoped, tag = 'scoped memory for tpu_custom_call.1']
    #allocation5 [shape = 'u8[8192]{0}', space=vmem, size = 0x2000, scoped, tag = 'input window, operand 1, single buffered']
    #allocation6 [shape = 's32[1]{0}', space=sflag, size = 0x4, scoped, tag = 'scoped memory for tpu_custom_call.1']
    #allocation7 [shape = 'u8[4096]{0}', space=vmem, size = 0x1000, scoped, tag = 'output window, operand 0, single buffered']
    %8 = vsyncpa [#allocation3], 0
    %9 = vsyncpa [#allocation6], 0
    %10 = vsyncpa [#allocation4], 0
    // Predicated region
    $region2: #{tpu_custom_call.1} parent=1 // pred_check
      _
    $region3: #{tpu_custom_call.1} parent=1 // pred_check_branch
      %12 = sbr.rel (0) target = $region5
    $region4: #{tpu_custom_call.1} parent=1 // pred_region
      %s14 = ssub.s32 64, 64
      %15 = vsyncadd [#allocation3], %s14
      %s17 = sshll.u32 [#allocation2], 4
      %s18 = int_to_ptr.vmem [resolvable:$true] %s17
      %20 = dma.hbm_to_vmem [thread:$0]  %s0, 64, %s18, [#allocation3]
    $region5: #{tpu_custom_call.1} parent=1 // pred_fallthru
      _
    // Predicated region
    $region6: #{tpu_custom_call.1} parent=1 // pred_check
      _
    $region7: #{tpu_custom_call.1} parent=1 // pred_check_branch
      %22 = sbr.rel (0) target = $region9
    $region8: #{tpu_custom_call.1} parent=1 // pred_region
      %s24 = ssub.s32 256, 256
      %25 = vsyncadd [#allocation6], %s24
      %s26 = sshll.u32 [#allocation5], 4
      %s27 = int_to_ptr.vmem [resolvable:$true] %s26
      %32 = dma.hbm_to_vmem [thread:$0]  %s1, 256, %s27, [#allocation6], 64, 64, 4
    $region9: #{tpu_custom_call.1} parent=1 // pred_fallthru
      _
    // Predicated region
    $region10: #{tpu_custom_call.1} parent=1 // pred_check
      _
    $region11: #{tpu_custom_call.1} parent=1 // pred_check_branch
      %34 = sbr.rel (0) target = $region13
    $region12: #{tpu_custom_call.1} parent=1 // pred_region
      _
    $region13: #{tpu_custom_call.1} parent=1 // pred_fallthru
      _
    // Predicated region
    $region14: #{tpu_custom_call.1} parent=1 // pred_check
      _
    $region15: #{tpu_custom_call.1} parent=1 // pred_check_branch
      %36 = sbr.rel (0) target = $region17
    $region16: #{tpu_custom_call.1} parent=1 // pred_region
      %37 = dma.done [#allocation3], 64
    $region17: #{tpu_custom_call.1} parent=1 // pred_fallthru
      _
    // Predicated region
    $region18: #{tpu_custom_call.1} parent=1 // pred_check
      _
    $region19: #{tpu_custom_call.1} parent=1 // pred_check_branch
      %39 = sbr.rel (0) target = $region21
    $region20: #{tpu_custom_call.1} parent=1 // pred_region
      %40 = dma.done [#allocation6], 256
    $region21: #{tpu_custom_call.1} parent=1 // pred_fallthru
      _
    %v42 = vld [vmem:[#allocation2] sm:$0xf]
    %v43 = vld [vmem:[#allocation5] sm:$0xf]
    %v44 = vld [vmem:[#allocation5 + $0x4] sm:$0xf]
    %v45 = vld [vmem:[#allocation5 + $0x8] sm:$0xf]
    %v46 = vld [vmem:[#allocation5 + $0xc] sm:$0xf]
    %v47 = vld [vmem:[%s2] sm:$0x1]
    %v49 = vlaneseq
    %v50 = vshrl.u32 %v49, 7
    %v51 = vsub.s32 0, %v50
    %v52 = vrot.slane %v47, %v51
    %v58 = vunpack.c.l.b16 %v43
    %v59 = vunpack.c.l.b16 %v44
    %v60 = vunpack.c.l.b16 %v45
    %v61 = vunpack.c.l.b16 %v46
    %v62 = vpack.c.b16 %v59, %v58
    %v63 = vpack.c.b16 %v61, %v60
    %vm66 = vcmask 261120
    %v68 = vsel %vm66, %v42, 0
    %70 = vmatprep.subr.bf16.mxu0 0
    %71 = vmatpush1.bf16.msra.mxu0 %v62
    %72 = vmatprep.subr.bf16.mxu0 0
    %73 = vmatpush1.bf16.msra.mxu0 %v63
    %74 = vmatprep.subr.bf16.mxu0 0
    %75 = vmatpush1.bf16.msra.mxu0 0
    %76 = vmatprep.subr.bf16.mxu0 0
    %77 = vmatpush1.bf16.msra.mxu0 0
    %78 = vmatprep.subr.bf16.mxu0 0
    %79 = vmatpush1.bf16.msra.mxu0 0
    %80 = vmatprep.subr.bf16.mxu0 0
    %81 = vmatpush1.bf16.msra.mxu0 0
    %82 = vmatprep.subr.bf16.mxu0 0
    %83 = vmatpush1.bf16.msra.mxu0 0
    %84 = vmatprep.subr.bf16.mxu0 0
    %85 = vmatpush1.bf16.msra.mxu0 0
    %86 = vmatprep.subr.bf16.mxu0 0
    %87 = vmatpush1.bf16.msra.mxu0 0
    %88 = vmatprep.subr.bf16.mxu0 0
    %89 = vmatpush1.bf16.msra.mxu0 0
    %90 = vmatprep.subr.bf16.mxu0 0
    %91 = vmatpush1.bf16.msra.mxu0 0
    %92 = vmatprep.subr.bf16.mxu0 0
    %93 = vmatpush1.bf16.msra.mxu0 0
    %94 = vmatprep.subr.bf16.mxu0 0
    %95 = vmatpush1.bf16.msra.mxu0 0
    %96 = vmatprep.subr.bf16.mxu0 0
    %97 = vmatpush1.bf16.msra.mxu0 0
    %98 = vmatprep.subr.bf16.mxu0 0
    %99 = vmatpush1.bf16.msra.mxu0 0
    %100 = vmatprep.subr.bf16.mxu0 0
    %101 = vmatpush1.bf16.msra.mxu0 0
    %102 = vmatprep.mubr.bf16.mxu0 0
    %103 = vmatmul.mubr.bf16.gmra.mrb[0].mxu0 %v68
    %v104 = vpop.f32.mrb[0].mxu0
    %v105 = vadd.f32 %v52, %v104
    %v106 = vpop.f32.mrb[0].mxu0
    %v107 = vpop.f32.mrb[0].mxu0
    %v108 = vpop.f32.mrb[0].mxu0
    %109 = vdwg.mxu0
    %110 = vst.msk [vmem:[#allocation7] sm:$0xff] %vm66, %v105
    // Predicated region
    $region22: #{tpu_custom_call.1} parent=1 // pred_check
      _
    $region23: #{tpu_custom_call.1} parent=1 // pred_check_branch
      %112 = sbr.rel (0) target = $region25
    $region24: #{tpu_custom_call.1} parent=1 // pred_region
      %s114 = ssub.s32 128, 128
      %115 = vsyncadd [#allocation4], %s114
      %s117 = sshll.u32 [#allocation7], 4
      %s118 = int_to_ptr.vmem [resolvable:$true] %s117
      %120 = dma.vmem_to_hbm [thread:$0]  %s118, 128, %s3, [#allocation4]
    $region25: #{tpu_custom_call.1} parent=1 // pred_fallthru
      _
    // Predicated region
    $region26: #{tpu_custom_call.1} parent=1 // pred_check
      _
    $region27: #{tpu_custom_call.1} parent=1 // pred_check_branch
      %122 = sbr.rel (0) target = $region29
    $region28: #{tpu_custom_call.1} parent=1 // pred_region
      %123 = dma.done [#allocation4], 128
    $region29: #{tpu_custom_call.1} parent=1 // pred_fallthru
      _
    %124 = vsyncpa [#allocation3], 1
    %125 = vsyncpa [#allocation6], 1
    %126 = vsyncpa [#allocation4], 1

</llo_original>
